<compile_context>
chip_gen: v7x
topology: tpu7x:2x2x1
jax: 0.10.0
libtpu: 0.0.40
codegen_flags: <defaults>
</compile_context>

<pallas_src>
import jax
import jax.numpy as jnp
from jax.experimental import pallas as pl
from jax.experimental.pallas import tpu as pltpu


_TILE_CAP = 4096  # rows per grid step; VMEM-safe on v5e/v6e/v7x


def _round_up(n, m):
    return ((n + m - 1) // m) * m


def _num_tensorcores_per_chip():
    """Perf-only heuristic: v7x exposes 2 TensorCores to one Pallas grid."""
    try:
        kind = jax.devices()[0].device_kind.lower()
    except Exception:
        return 1
    return 2 if "7" in kind else 1


def _pick_batch_tile(batch, num_cores):
    """Large tiles to amortize the ~0.35 us per-grid-step overhead.

    Single-TC chips (v5e/v6e): one tile covering the padded batch when it fits
    the cap.  2-TC chips (v7x): pick the tile so the grid has an even (>=2)
    number of steps for balanced megacore sharding, still under the cap.
    """
    b8 = _round_up(max(batch, 8), 8)
    if num_cores <= 1 or b8 <= 8:
        return min(_TILE_CAP, b8)
    steps = 2
    while _round_up(pl.cdiv(b8, steps), 8) > _TILE_CAP:
        steps += 2
    return _round_up(pl.cdiv(b8, steps), 8)


def dqn_kernel(x_ref, wih_ref, bg_ref, w1_ref, b1_ref, w2_ref, b2_ref, o_ref):
    """One grid step processes a (TB, input_size) tile of the (padded) batch."""
    H = w1_ref.shape[0]

    # In-kernel bf16 cast (free VPU filler) instead of a wrapper-side HBM pass.
    x = x_ref[...].astype(wih_ref.dtype)                          # (TB, I)  bf16
    gates = jnp.dot(x, wih_ref[...],
                    preferred_element_type=jnp.float32) + bg_ref[...]  # (TB, 4H) f32

    # Full-width transcendentals: two fully-utilized EUP passes over the whole
    # 4H-lane gates block, then slice out the i / g / o pieces.
    sig = jax.nn.sigmoid(gates)                                   # (TB, 4H)
    th = jnp.tanh(gates)                                          # (TB, 4H)
    i_g = sig[:, 0 * H:1 * H]
    g_g = th[:, 2 * H:3 * H]
    o_g = sig[:, 3 * H:4 * H]

    # c0 == 0 -> forget-gate term drops.  h0 == 0 -> no recurrent matmul.
    c = i_g * g_g                                                 # (TB, H)
    h = o_g * jnp.tanh(c)                                         # (TB, H) f32

    h1 = jnp.maximum(
        jnp.dot(h.astype(w1_ref.dtype), w1_ref[...],
                preferred_element_type=jnp.float32) + b1_ref[...],
        0.0)                                                      # (TB, H)
    out = jnp.dot(h1.astype(w2_ref.dtype), w2_ref[...],
                  preferred_element_type=jnp.float32) + b2_ref[...]    # (TB, O)
    o_ref[...] = out                                              # narrow f32 store


def dqn_forward(x, params, *, batch_tile=None, compute_dtype=jnp.bfloat16):
    """Wrapper: tiles the (padded-if-needed) batch; weights stay grid-resident."""
    wih_t, bias_gates, w1_t, b1, w2_t, b2 = params
    B, I = x.shape
    H4 = wih_t.shape[1]
    H = w1_t.shape[0]
    O = w2_t.shape[1]

    # Batch tiling: pad the batch up to the tile only when needed.
    if batch_tile is None:
        batch_tile = _pick_batch_tile(B, _num_tensorcores_per_chip())
    Bp = _round_up(B, batch_tile)
    if Bp != B:
        x = jnp.pad(x, ((0, Bp - B), (0, 0)))

    # bf16 matmul weights (MXU native), f32 accumulation; biases stay f32.
    # x stays f32 here and is cast inside the kernel (saves an HBM pass).
    wih_c = wih_t.astype(compute_dtype)
    w1_c = w1_t.astype(compute_dtype)
    w2_c = w2_t.astype(compute_dtype)

    grid = (Bp // batch_tile,)
    full = lambda i: (0, 0)

    cost = pl.CostEstimate(
        flops=2 * Bp * (I * H4 + H * H + H * O),
        transcendentals=Bp * (2 * H4 + H),
        bytes_accessed=(Bp * I * 4 + Bp * O * 4
                        + I * H4 * 2 + H * H * 2 + H * O * 2
                        + (H4 + H + O) * 4),
    )

    out = pl.pallas_call(
        dqn_kernel,
        out_shape=jax.ShapeDtypeStruct((Bp, O), jnp.float32),
        grid_spec=pltpu.PrefetchScalarGridSpec(
            num_scalar_prefetch=0,
            grid=grid,
            in_specs=[
                pl.BlockSpec((batch_tile, I), lambda i: (i, 0)),  # x tile (f32)
                pl.BlockSpec((I, H4), full),                      # W_ih^T
                pl.BlockSpec((1, H4), full),                      # b_ih + b_hh
                pl.BlockSpec((H, H), full),                       # W_fc1^T
                pl.BlockSpec((1, H), full),                       # b_fc1
                pl.BlockSpec((H, O), full),                       # W_fc2^T
                pl.BlockSpec((1, O), full),                       # b_fc2
            ],
            out_specs=pl.BlockSpec((batch_tile, O), lambda i: (i, 0)),
        ),
        compiler_params=pltpu.CompilerParams(
            dimension_semantics=("parallel",)),
        cost_estimate=cost,
    )(x, wih_c, bias_gates, w1_c, b1, w2_c, b2)

    return out if Bp == B else out[:B]


def dqn_reference(x, params, compute_dtype=jnp.float32):
    """Pure-JAX reference (single-step LSTM, h0=c0=0, then fc stack)."""
    wih_t, bias_gates, w1_t, b1, w2_t, b2 = params
    H = w1_t.shape[0]
    dot = lambda a, b: jnp.dot(a.astype(compute_dtype), b.astype(compute_dtype),
                               preferred_element_type=jnp.float32)
    gates = dot(x, wih_t) + bias_gates
    sig = jax.nn.sigmoid(gates)
    th = jnp.tanh(gates)
    h = sig[:, 3 * H:] * jnp.tanh(sig[:, :H] * th[:, 2 * H:3 * H])
    h1 = jnp.maximum(dot(h, w1_t) + b1, 0.0)
    return dot(h1, w2_t) + b2


def make_params(key, input_size, hidden_size, output_size):
    """Deterministic synthetic parameters (shapes follow nn.LSTM / nn.Linear)."""
    ks = jax.random.split(key, 8)
    H4 = 4 * hidden_size
    scale = 0.1
    # nn.LSTM: weight_ih_l0 (4H, I), weight_hh_l0 (4H, H), b_ih (4H,), b_hh (4H,)
    w_ih = scale * jax.random.normal(ks[0], (H4, input_size), jnp.float32)
    b_ih = scale * jax.random.normal(ks[1], (H4,), jnp.float32)
    b_hh = scale * jax.random.normal(ks[2], (H4,), jnp.float32)
    # fc_num = 2: Linear(H, H) + ReLU, Linear(H, output)
    w_fc1 = scale * jax.random.normal(ks[3], (hidden_size, hidden_size), jnp.float32)
    b_fc1 = scale * jax.random.normal(ks[4], (hidden_size,), jnp.float32)
    w_fc2 = scale * jax.random.normal(ks[5], (output_size, hidden_size), jnp.float32)
    b_fc2 = scale * jax.random.normal(ks[6], (output_size,), jnp.float32)

    # Pre-transpose weights and pre-sum the LSTM biases (h0 == 0, c0 == 0).
    return (
        w_ih.T,                                   # (I, 4H)
        (b_ih + b_hh).reshape(1, H4),             # (1, 4H)
        w_fc1.T,                                  # (H, H)
        b_fc1.reshape(1, hidden_size),            # (1, H)
        w_fc2.T,                                  # (H, O)
        b_fc2.reshape(1, output_size),            # (1, O)
    )


if __name__ == "__main__":
    batch = 8
    input_size = 16
    hidden_size = 32
    output_size = 4
    # fc_num = 2 -> one hidden Linear+ReLU then the output Linear.

    key = jax.random.PRNGKey(0)
    kx, kp = jax.random.split(key)
    x = jax.random.normal(kx, (batch, input_size), jnp.float32)
    params = make_params(kp, input_size, hidden_size, output_size)

    out = dqn_forward(x, params)
    out = jax.block_until_ready(out)

    assert out.shape == (batch, output_size)
    # Reference with identical bf16 quantization of matmul operands.
    ref_matched = dqn_reference(x, params, compute_dtype=jnp.bfloat16)
    assert jnp.allclose(out, ref_matched, atol=1e-2, rtol=1e-2), "mismatch (bf16 ref)"
    # Full-fp32 reference: semantics preserved within bf16 rounding
    # (intentional precision change vs the f32 PyTorch module; documented).
    ref_f32 = dqn_reference(x, params, compute_dtype=jnp.float32)
    assert jnp.allclose(out, ref_f32, atol=5e-2, rtol=5e-2), "mismatch (f32 ref)"

    print("KERNEL_OK")
</pallas_src>

<mosaic_0001>
module attributes {stable_mosaic.version = 11 : i64} {
  func.func @dqn_kernel(%arg0: i32, %arg1: memref<8x16xf32, #tpu.memory_space<vmem>>, %arg2: memref<16x128xbf16, #tpu.memory_space<vmem>>, %arg3: memref<1x128xf32, #tpu.memory_space<vmem>>, %arg4: memref<32x32xbf16, #tpu.memory_space<vmem>>, %arg5: memref<1x32xf32, #tpu.memory_space<vmem>>, %arg6: memref<32x4xbf16, #tpu.memory_space<vmem>>, %arg7: memref<1x4xf32, #tpu.memory_space<vmem>>, %arg8: memref<8x4xf32, #tpu.memory_space<vmem>>) attributes {dimension_semantics = [#tpu.dimension_semantics<parallel>], iteration_bounds = array<i64: 1>, scalar_prefetch = 0 : i64, scratch_operands = 0 : i64, tpu.core_type = #tpu.core_type<tc>, window_params = [{transform_indices = @transform_0, window_bounds = array<i64: 8, 16>}, {pipeline_mode = #tpu.pipeline_mode<synchronous>, transform_indices = @transform_1, window_bounds = array<i64: 16, 128>}, {pipeline_mode = #tpu.pipeline_mode<synchronous>, transform_indices = @transform_2, window_bounds = array<i64: 1, 128>}, {pipeline_mode = #tpu.pipeline_mode<synchronous>, transform_indices = @transform_3, window_bounds = array<i64: 32, 32>}, {pipeline_mode = #tpu.pipeline_mode<synchronous>, transform_indices = @transform_4, window_bounds = array<i64: 1, 32>}, {pipeline_mode = #tpu.pipeline_mode<synchronous>, transform_indices = @transform_5, window_bounds = array<i64: 32, 4>}, {pipeline_mode = #tpu.pipeline_mode<synchronous>, transform_indices = @transform_6, window_bounds = array<i64: 1, 4>}, {transform_indices = @transform_7, window_bounds = array<i64: 8, 4>}]} {
    %c0 = arith.constant 0 : index
    %c0_0 = arith.constant 0 : index
    %0 = vector.load %arg1[%c0, %c0_0] : memref<8x16xf32, #tpu.memory_space<vmem>>, vector<8x16xf32>
    %1 = arith.truncf %0 : vector<8x16xf32> to vector<8x16xbf16>
    %c0_1 = arith.constant 0 : index
    %c0_2 = arith.constant 0 : index
    %2 = vector.load %arg2[%c0_1, %c0_2] : memref<16x128xbf16, #tpu.memory_space<vmem>>, vector<16x128xbf16>
    %cst = arith.constant dense<0.000000e+00> : vector<8x128xf32>
    %3 = tpu.matmul %1, %2, %cst {dimension_numbers = #tpu.dot_dimension_numbers<[1], [0], [0], [1], [0, 0, 1, 1], [], []>} : vector<8x16xbf16>, vector<16x128xbf16>, vector<8x128xf32> -> vector<8x128xf32>
    %c0_3 = arith.constant 0 : index
    %c0_4 = arith.constant 0 : index
    %4 = vector.load %arg3[%c0_3, %c0_4] : memref<1x128xf32, #tpu.memory_space<vmem>>, vector<1x128xf32>
    %5 = vector.broadcast %4 : vector<1x128xf32> to vector<8x128xf32>
    %6 = arith.addf %3, %5 : vector<8x128xf32>
    %7 = arith.negf %6 : vector<8x128xf32>
    %8 = math.exp %7 : vector<8x128xf32>
    %cst_5 = arith.constant 1.000000e+00 : f32
    %9 = vector.broadcast %cst_5 : f32 to vector<8x128xf32>
    %10 = arith.addf %9, %8 : vector<8x128xf32>
    %11 = arith.divf %9, %10 : vector<8x128xf32>
    %12 = math.tanh %6 : vector<8x128xf32>
    %13 = vector.extract_strided_slice %11 {offsets = [0, 0], sizes = [8, 32], strides = [1, 1]} : vector<8x128xf32> to vector<8x32xf32>
    %14 = vector.extract_strided_slice %12 {offsets = [0, 64], sizes = [8, 32], strides = [1, 1]} : vector<8x128xf32> to vector<8x32xf32>
    %15 = vector.extract_strided_slice %11 {offsets = [0, 96], sizes = [8, 32], strides = [1, 1]} : vector<8x128xf32> to vector<8x32xf32>
    %16 = arith.mulf %13, %14 : vector<8x32xf32>
    %17 = math.tanh %16 : vector<8x32xf32>
    %18 = arith.mulf %15, %17 : vector<8x32xf32>
    %19 = arith.truncf %18 : vector<8x32xf32> to vector<8x32xbf16>
    %c0_6 = arith.constant 0 : index
    %c0_7 = arith.constant 0 : index
    %20 = vector.load %arg4[%c0_6, %c0_7] : memref<32x32xbf16, #tpu.memory_space<vmem>>, vector<32x32xbf16>
    %cst_8 = arith.constant dense<0.000000e+00> : vector<8x32xf32>
    %21 = tpu.matmul %19, %20, %cst_8 {dimension_numbers = #tpu.dot_dimension_numbers<[1], [0], [0], [1], [0, 0, 1, 1], [], []>} : vector<8x32xbf16>, vector<32x32xbf16>, vector<8x32xf32> -> vector<8x32xf32>
    %c0_9 = arith.constant 0 : index
    %c0_10 = arith.constant 0 : index
    %22 = vector.load %arg5[%c0_9, %c0_10] : memref<1x32xf32, #tpu.memory_space<vmem>>, vector<1x32xf32>
    %23 = vector.broadcast %22 : vector<1x32xf32> to vector<8x32xf32>
    %24 = arith.addf %21, %23 : vector<8x32xf32>
    %cst_11 = arith.constant 0.000000e+00 : f32
    %25 = vector.broadcast %cst_11 : f32 to vector<8x32xf32>
    %26 = arith.maximumf %24, %25 : vector<8x32xf32>
    %27 = arith.truncf %26 : vector<8x32xf32> to vector<8x32xbf16>
    %c0_12 = arith.constant 0 : index
    %c0_13 = arith.constant 0 : index
    %28 = vector.load %arg6[%c0_12, %c0_13] : memref<32x4xbf16, #tpu.memory_space<vmem>>, vector<32x4xbf16>
    %cst_14 = arith.constant dense<0.000000e+00> : vector<8x4xf32>
    %29 = tpu.matmul %27, %28, %cst_14 {dimension_numbers = #tpu.dot_dimension_numbers<[1], [0], [0], [1], [0, 0, 1, 1], [], []>} : vector<8x32xbf16>, vector<32x4xbf16>, vector<8x4xf32> -> vector<8x4xf32>
    %c0_15 = arith.constant 0 : index
    %c0_16 = arith.constant 0 : index
    %30 = vector.load %arg7[%c0_15, %c0_16] : memref<1x4xf32, #tpu.memory_space<vmem>>, vector<1x4xf32>
    %31 = vector.broadcast %30 : vector<1x4xf32> to vector<8x4xf32>
    %32 = arith.addf %29, %31 : vector<8x4xf32>
    %c0_17 = arith.constant 0 : index
    %c0_18 = arith.constant 0 : index
    %33 = vector.load %arg8[%c0_17, %c0_18] : memref<8x4xf32, #tpu.memory_space<vmem>>, vector<8x4xf32>
    tpu.vector_store %arg8[%c0_17, %c0_18], %32 {strides = array<i32>} : memref<8x4xf32, #tpu.memory_space<vmem>>, vector<8x4xf32>,
    return
  }
  func.func @transform_0(%arg0: i32) -> (i32, i32) {
    %c0_i32 = arith.constant 0 : i32
    %c0_i32_0 = arith.constant 0 : i32
    return %arg0, %c0_i32 : i32, i32
  }
  func.func @transform_1(%arg0: i32) -> (i32, i32) {
    %c0_i32 = arith.constant 0 : i32
    %c0_i32_0 = arith.constant 0 : i32
    %c0_i32_1 = arith.constant 0 : i32
    return %c0_i32, %c0_i32_0 : i32, i32
  }
  func.func @transform_2(%arg0: i32) -> (i32, i32) {
    %c0_i32 = arith.constant 0 : i32
    %c0_i32_0 = arith.constant 0 : i32
    %c0_i32_1 = arith.constant 0 : i32
    return %c0_i32, %c0_i32_0 : i32, i32
  }
  func.func @transform_3(%arg0: i32) -> (i32, i32) {
    %c0_i32 = arith.constant 0 : i32
    %c0_i32_0 = arith.constant 0 : i32
    %c0_i32_1 = arith.constant 0 : i32
    return %c0_i32, %c0_i32_0 : i32, i32
  }
  func.func @transform_4(%arg0: i32) -> (i32, i32) {
    %c0_i32 = arith.constant 0 : i32
    %c0_i32_0 = arith.constant 0 : i32
    %c0_i32_1 = arith.constant 0 : i32
    return %c0_i32, %c0_i32_0 : i32, i32
  }
  func.func @transform_5(%arg0: i32) -> (i32, i32) {
    %c0_i32 = arith.constant 0 : i32
    %c0_i32_0 = arith.constant 0 : i32
    %c0_i32_1 = arith.constant 0 : i32
    return %c0_i32, %c0_i32_0 : i32, i32
  }
  func.func @transform_6(%arg0: i32) -> (i32, i32) {
    %c0_i32 = arith.constant 0 : i32
    %c0_i32_0 = arith.constant 0 : i32
    %c0_i32_1 = arith.constant 0 : i32
    return %c0_i32, %c0_i32_0 : i32, i32
  }
  func.func @transform_7(%arg0: i32) -> (i32, i32) {
    %c0_i32 = arith.constant 0 : i32
    %c0_i32_0 = arith.constant 0 : i32
    return %arg0, %c0_i32 : i32, i32
  }
}

</mosaic_0001>

<llo_original>
// kernel: tpu_custom_call.1
$region0: #{tpu_custom_call.1}
  #allocation0 [shape = 'u32[]', space=smem, size = 0x4, offset = 0x4, fixed_abs, tag = 'smem constant byte address 0x4 - core index']
  #allocation1 [shape = 'u32[144,128]{1,0:T(1,128)}', space=vmem, size = 0x12000, scoped, tag = 'internal scratch']
  %s0 = inlined_call_operand.vmem [shape: f32[8,16], index: 0, kind: input, shape index: {}]
  %s1 = inlined_call_operand.hbm [shape: bf16[16,128], index: 1, kind: input, shape index: {}]
  %s2 = inlined_call_operand.vmem [shape: f32[1,128], index: 2, kind: input, shape index: {}]
  %s3 = inlined_call_operand.vmem [shape: bf16[32,32], index: 3, kind: input, shape index: {}]
  %s4 = inlined_call_operand.vmem [shape: f32[1,32], index: 4, kind: input, shape index: {}]
  %s5 = inlined_call_operand.vmem [shape: bf16[32,4], index: 5, kind: input, shape index: {}]
  %s6 = inlined_call_operand.vmem [shape: f32[1,4], index: 6, kind: input, shape index: {}]
  %s7 = inlined_call_operand.vmem [shape: f32[8,4], index: 7, kind: output, shape index: {}]
  %s8 = sld [smem:[#allocation0]]
  $region42: #{tpu_custom_call.1} parent=0
    _
  %s10 = ssub.s32 1, %s8
  %s11 = scalar_select 0, %s10, %s8
  $region1: #{tpu_custom_call.1} parent=0
    #allocation2 [shape = 'u8[4096]{0}', space=vmem, size = 0x1000, scoped, tag = 'input window, operand 1, single buffered']
    #allocation3 [shape = 's32[1]{0}', space=sflag, size = 0x4, scoped, tag = 'scoped memory for tpu_custom_call.1']
    %12 = vsyncpa [#allocation3], 0
    // Predicated region
    $region2: #{tpu_custom_call.1} parent=1 // pred_check
      _
    $region3: #{tpu_custom_call.1} parent=1 // pred_check_branch
      %14 = sbr.rel (0) target = $region5
    $region4: #{tpu_custom_call.1} parent=1 // pred_region
      _
    $region5: #{tpu_custom_call.1} parent=1 // pred_fallthru
      _
    // Predicated region
    $region6: #{tpu_custom_call.1} parent=1 // pred_check
      _
    $region7: #{tpu_custom_call.1} parent=1 // pred_check_branch
      %16 = sbr.rel (0) target = $region9
    $region8: #{tpu_custom_call.1} parent=1 // pred_region
      %s18 = ssub.s32 128, 128
      %19 = vsyncadd [#allocation3], %s18
      %s20 = sshll.u32 [#allocation2], 4
      %s21 = int_to_ptr.vmem [resolvable:$true] %s20
      %26 = dma.hbm_to_vmem [thread:$0]  %s1, 128, %s21, [#allocation3], 64, 64, 4
    $region9: #{tpu_custom_call.1} parent=1 // pred_fallthru
      _
    // Predicated region
    $region10: #{tpu_custom_call.1} parent=1 // pred_check
      _
    $region11: #{tpu_custom_call.1} parent=1 // pred_check_branch
      %28 = sbr.rel (0) target = $region13
    $region12: #{tpu_custom_call.1} parent=1 // pred_region
      _
    $region13: #{tpu_custom_call.1} parent=1 // pred_fallthru
      _
    // Predicated region
    $region14: #{tpu_custom_call.1} parent=1 // pred_check
      _
    $region15: #{tpu_custom_call.1} parent=1 // pred_check_branch
      %30 = sbr.rel (0) target = $region17
    $region16: #{tpu_custom_call.1} parent=1 // pred_region
      _
    $region17: #{tpu_custom_call.1} parent=1 // pred_fallthru
      _
    // Predicated region
    $region18: #{tpu_custom_call.1} parent=1 // pred_check
      _
    $region19: #{tpu_custom_call.1} parent=1 // pred_check_branch
      %32 = sbr.rel (0) target = $region21
    $region20: #{tpu_custom_call.1} parent=1 // pred_region
      _
    $region21: #{tpu_custom_call.1} parent=1 // pred_fallthru
      _
    // Predicated region
    $region22: #{tpu_custom_call.1} parent=1 // pred_check
      _
    $region23: #{tpu_custom_call.1} parent=1 // pred_check_branch
      %34 = sbr.rel (0) target = $region25
    $region24: #{tpu_custom_call.1} parent=1 // pred_region
      _
    $region25: #{tpu_custom_call.1} parent=1 // pred_fallthru
      _
    // Predicated region
    $region26: #{tpu_custom_call.1} parent=1 // pred_check
      _
    $region27: #{tpu_custom_call.1} parent=1 // pred_check_branch
      %36 = sbr.rel (0) target = $region29
    $region28: #{tpu_custom_call.1} parent=1 // pred_region
      _
    $region29: #{tpu_custom_call.1} parent=1 // pred_fallthru
      _
    // Predicated region
    $region30: #{tpu_custom_call.1} parent=1 // pred_check
      _
    $region31: #{tpu_custom_call.1} parent=1 // pred_check_branch
      %38 = sbr.rel (0) target = $region33
    $region32: #{tpu_custom_call.1} parent=1 // pred_region
      %39 = dma.done [#allocation3], 128
    $region33: #{tpu_custom_call.1} parent=1 // pred_fallthru
      _
    %v41 = vld [vmem:[%s0] sm:$0xff]
    %v42 = vpack.c.bf16 %v41, %v41
    %v43 = vld [vmem:[#allocation2] sm:$0xf]
    %v44 = vld [vmem:[#allocation2 + $0x4] sm:$0xf]
    %v45 = vld [vmem:[%s2] sm:$0x1]
    %v47 = vlaneseq
    %v48 = vshrl.u32 %v47, 7
    %v49 = vsub.s32 0, %v48
    %v50 = vrot.slane %v45, %v49
    %v54 = vunpack.c.l.b16 %v43
    %v55 = vunpack.c.l.b16 %v44
    %v56 = vpack.c.b16 %v55, %v54
    %vm58 = vcmask 130048
    %v60 = vsel %vm58, %v42, 0
    %62 = vmatprep.subr.bf16.mxu0 0
    %63 = vmatpush1.bf16.msra.mxu0 %v56
    %64 = vmatprep.subr.bf16.mxu0 0
    %65 = vmatpush1.bf16.msra.mxu0 0
    %66 = vmatprep.subr.bf16.mxu0 0
    %67 = vmatpush1.bf16.msra.mxu0 0
    %68 = vmatprep.subr.bf16.mxu0 0
    %69 = vmatpush1.bf16.msra.mxu0 0
    %70 = vmatprep.subr.bf16.mxu0 0
    %71 = vmatpush1.bf16.msra.mxu0 0
    %72 = vmatprep.subr.bf16.mxu0 0
    %73 = vmatpush1.bf16.msra.mxu0 0
    %74 = vmatprep.subr.bf16.mxu0 0
    %75 = vmatpush1.bf16.msra.mxu0 0
    %76 = vmatprep.subr.bf16.mxu0 0
    %77 = vmatpush1.bf16.msra.mxu0 0
    %78 = vmatprep.subr.bf16.mxu0 0
    %79 = vmatpush1.bf16.msra.mxu0 0
    %80 = vmatprep.subr.bf16.mxu0 0
    %81 = vmatpush1.bf16.msra.mxu0 0
    %82 = vmatprep.subr.bf16.mxu0 0
    %83 = vmatpush1.bf16.msra.mxu0 0
    %84 = vmatprep.subr.bf16.mxu0 0
    %85 = vmatpush1.bf16.msra.mxu0 0
    %86 = vmatprep.subr.bf16.mxu0 0
    %87 = vmatpush1.bf16.msra.mxu0 0
    %88 = vmatprep.subr.bf16.mxu0 0
    %89 = vmatpush1.bf16.msra.mxu0 0
    %90 = vmatprep.subr.bf16.mxu0 0
    %91 = vmatpush1.bf16.msra.mxu0 0
    %92 = vmatprep.subr.bf16.mxu0 0
    %93 = vmatpush1.bf16.msra.mxu0 0
    %94 = vmatprep.mubr.bf16.mxu0 0
    %95 = vmatmul.mubr.bf16.gmra.mrb[0].mxu0 %v60
    %v96 = vpop.f32.mrb[0].mxu0
    %v97 = vadd.f32 %v50, %v96
    %v98 = vpop.f32.mrb[0].mxu0
    %v99 = vpop.f32.mrb[0].mxu0
    %v100 = vpop.f32.mrb[0].mxu0
    %101 = vdwg.mxu0
    %v102 = vxor.u32 %v97, 2147483648
    %v103 = vmul.f32 %v102, 1.442695
    %v104 = vpow.pop %v103
    %v105 = vadd.f32 %v104, 1.0
    %v106 = vrcp.pop %v105
    %v107 = vmul.f32 1.0, %v106
    %v108 = vtanh.pop %v97
    %110 = vrot.lane.b32.xlu0 %v108, 64
    %v111 = vpop.permute.xlu0 %110
    %v113 = vmul.f32 %v107, %v111
    %v114 = vtanh.pop %v113
    %116 = vrot.lane.b32.xlu0 %v114, 96
    %v117 = vpop.permute.xlu0 %116
    %v119 = vmul.f32 %v107, %v117
    %v120 = vpack.c.bf16 %v119, %v119
    %v121 = vld [vmem:[%s3] sm:$0xf]
    %v122 = vld [vmem:[%s3 + $0x4] sm:$0xf]
    %v123 = vld [vmem:[%s3 + $0x8] sm:$0xf]
    %v124 = vld [vmem:[%s3 + $0xc] sm:$0xf]
    %v125 = vld [vmem:[%s4] sm:$0x1]
    %v127 = vlaneseq
    %v128 = vshrl.u32 %v127, 7
    %v129 = vsub.s32 0, %v128
    %v130 = vrot.slane %v125, %v129
    %133 = vrot.lane.b32.xlu0 %v120, 32
    %v134 = vpop.permute.xlu0 %133
    %v139 = vunpack.c.l.b16 %v121
    %v140 = vunpack.c.l.b16 %v122
    %v141 = vunpack.c.l.b16 %v123
    %v142 = vunpack.c.l.b16 %v124
    %v143 = vpack.c.b16 %v140, %v139
    %v144 = vpack.c.b16 %v142, %v141
    %vm147 = vcmask 261120
    %v149 = vsel %vm147, %v134, 0
    %151 = vmatprep.subr.bf16.mxu0 0
    %152 = vmatpush1.bf16.msra.mxu0 %v143
    %153 = vmatprep.subr.bf16.mxu0 0
    %154 = vmatpush1.bf16.msra.mxu0 %v144
    %155 = vmatprep.subr.bf16.mxu0 0
    %156 = vmatpush1.bf16.msra.mxu0 0
    %157 = vmatprep.subr.bf16.mxu0 0
    %158 = vmatpush1.bf16.msra.mxu0 0
    %159 = vmatprep.subr.bf16.mxu0 0
    %160 = vmatpush1.bf16.msra.mxu0 0
    %161 = vmatprep.subr.bf16.mxu0 0
    %162 = vmatpush1.bf16.msra.mxu0 0
    %163 = vmatprep.subr.bf16.mxu0 0
    %164 = vmatpush1.bf16.msra.mxu0 0
    %165 = vmatprep.subr.bf16.mxu0 0
    %166 = vmatpush1.bf16.msra.mxu0 0
    %167 = vmatprep.subr.bf16.mxu0 0
    %168 = vmatpush1.bf16.msra.mxu0 0
    %169 = vmatprep.subr.bf16.mxu0 0
    %170 = vmatpush1.bf16.msra.mxu0 0
    %171 = vmatprep.subr.bf16.mxu0 0
    %172 = vmatpush1.bf16.msra.mxu0 0
    %173 = vmatprep.subr.bf16.mxu0 0
    %174 = vmatpush1.bf16.msra.mxu0 0
    %175 = vmatprep.subr.bf16.mxu0 0
    %176 = vmatpush1.bf16.msra.mxu0 0
    %177 = vmatprep.subr.bf16.mxu0 0
    %178 = vmatpush1.bf16.msra.mxu0 0
    %179 = vmatprep.subr.bf16.mxu0 0
    %180 = vmatpush1.bf16.msra.mxu0 0
    %181 = vmatprep.subr.bf16.mxu0 0
    %182 = vmatpush1.bf16.msra.mxu0 0
    %183 = vmatprep.mubr.bf16.mxu0 0
    %184 = vmatmul.mubr.bf16.gmra.mrb[0].mxu0 %v149
    %v185 = vpop.f32.mrb[0].mxu0
    %v186 = vadd.f32 %v130, %v185
    %v187 = vpop.f32.mrb[0].mxu0
    %v188 = vpop.f32.mrb[0].mxu0
    %v189 = vpop.f32.mrb[0].mxu0
    %190 = vdwg.mxu0
    %v191 = vmax.f32 %v186, 0.0
    %v192 = vpack.c.bf16 %v191, %v191
    %v193 = vld [vmem:[%s5] sm:$0xf]
    %v194 = vld [vmem:[%s5 + $0x4] sm:$0xf]
    %v195 = vld [vmem:[%s5 + $0x8] sm:$0xf]
    %v196 = vld [vmem:[%s5 + $0xc] sm:$0xf]
    %v197 = vld [vmem:[%s6] sm:$0x1]
    %v199 = vlaneseq
    %v200 = vshrl.u32 %v199, 7
    %v201 = vsub.s32 0, %v200
    %v202 = vrot.slane %v197, %v201
    %v208 = vunpack.c.l.b16 %v193
    %v209 = vunpack.c.l.b16 %v194
    %v210 = vunpack.c.l.b16 %v195
    %v211 = vunpack.c.l.b16 %v196
    %v212 = vpack.c.b16 %v209, %v208
    %v213 = vpack.c.b16 %v211, %v210
    %v217 = vsel %vm147, %v192, 0
    %219 = vmatprep.subr.bf16.mxu0 0
    %220 = vmatpush1.bf16.msra.mxu0 %v212
    %221 = vmatprep.subr.bf16.mxu0 0
    %222 = vmatpush1.bf16.msra.mxu0 %v213
    %223 = vmatprep.subr.bf16.mxu0 0
    %224 = vmatpush1.bf16.msra.mxu0 0
    %225 = vmatprep.subr.bf16.mxu0 0
    %226 = vmatpush1.bf16.msra.mxu0 0
    %227 = vmatprep.subr.bf16.mxu0 0
    %228 = vmatpush1.bf16.msra.mxu0 0
    %229 = vmatprep.subr.bf16.mxu0 0
    %230 = vmatpush1.bf16.msra.mxu0 0
    %231 = vmatprep.subr.bf16.mxu0 0
    %232 = vmatpush1.bf16.msra.mxu0 0
    %233 = vmatprep.subr.bf16.mxu0 0
    %234 = vmatpush1.bf16.msra.mxu0 0
    %235 = vmatprep.subr.bf16.mxu0 0
    %236 = vmatpush1.bf16.msra.mxu0 0
    %237 = vmatprep.subr.bf16.mxu0 0
    %238 = vmatpush1.bf16.msra.mxu0 0
    %239 = vmatprep.subr.bf16.mxu0 0
    %240 = vmatpush1.bf16.msra.mxu0 0
    %241 = vmatprep.subr.bf16.mxu0 0
    %242 = vmatpush1.bf16.msra.mxu0 0
    %243 = vmatprep.subr.bf16.mxu0 0
    %244 = vmatpush1.bf16.msra.mxu0 0
    %245 = vmatprep.subr.bf16.mxu0 0
    %246 = vmatpush1.bf16.msra.mxu0 0
    %247 = vmatprep.subr.bf16.mxu0 0
    %248 = vmatpush1.bf16.msra.mxu0 0
    %249 = vmatprep.subr.bf16.mxu0 0
    %250 = vmatpush1.bf16.msra.mxu0 0
    %251 = vmatprep.mubr.bf16.mxu0 0
    %252 = vmatmul.mubr.bf16.gmra.mrb[0].mxu0 %v217
    %v253 = vpop.f32.mrb[0].mxu0
    %v254 = vadd.f32 %v202, %v253
    %v255 = vpop.f32.mrb[0].mxu0
    %v256 = vpop.f32.mrb[0].mxu0
    %v257 = vpop.f32.mrb[0].mxu0
    %258 = vdwg.mxu0
    %vm259 = vcmask 31744
    %260 = vst.msk [vmem:[%s7] sm:$0xff] %vm259, %v254
    // Predicated region
    $region34: #{tpu_custom_call.1} parent=1 // pred_check
      _
    $region35: #{tpu_custom_call.1} parent=1 // pred_check_branch
      %262 = sbr.rel (0) target = $region37
    $region36: #{tpu_custom_call.1} parent=1 // pred_region
      _
    $region37: #{tpu_custom_call.1} parent=1 // pred_fallthru
      _
    // Predicated region
    $region38: #{tpu_custom_call.1} parent=1 // pred_check
      _
    $region39: #{tpu_custom_call.1} parent=1 // pred_check_branch
      %264 = sbr.rel (0) target = $region41
    $region40: #{tpu_custom_call.1} parent=1 // pred_region
      _
    $region41: #{tpu_custom_call.1} parent=1 // pred_fallthru
      _
    %265 = vsyncpa [#allocation3], 1

</llo_original>
